<compile_context>
chip_gen: v6e
topology: v6e:2x2x1
jax: 0.10.0
libtpu: 0.0.40
codegen_flags: <defaults>
</compile_context>

<pallas_src>
import functools

import jax
import jax.numpy as jnp
from jax import lax
from jax.experimental import pallas as pl
from jax.experimental.pallas import tpu as pltpu


# ---------------------------------------------------------------------------
# Kernels
# ---------------------------------------------------------------------------

_GRAM_DNUMS = (((1,), (1,)), ((), ()))  # contract axis 1 of lhs with axis 1 of rhs


def gram_accum_kernel(x_ref, g_ref):
    """Accumulate X @ X.T over spatial tiles directly into the resident output."""
    @pl.when(pl.program_id(0) == 0)
    def _():
        g_ref[...] = jnp.zeros_like(g_ref)

    x = x_ref[...]
    g_ref[...] += lax.dot_general(
        x, x,
        dimension_numbers=_GRAM_DNUMS,
        preferred_element_type=jnp.float32,
    )


def style_loss_kernel(x_ref, tgt_ref, o_ref, acc_ref, *, inv_count):
    """Tiled gram accumulation + final MSE against the resident target gram."""
    k = pl.program_id(0)

    @pl.when(k == 0)
    def _():
        acc_ref[...] = jnp.zeros_like(acc_ref)

    x = x_ref[...]
    acc_ref[...] += lax.dot_general(
        x, x,
        dimension_numbers=_GRAM_DNUMS,
        preferred_element_type=jnp.float32,
    )

    @pl.when(k == pl.num_programs(0) - 1)
    def _():
        diff = acc_ref[...] - tgt_ref[...]
        o_ref[...] = (jnp.sum(diff * diff) * inv_count).reshape(1, 1)


# ---------------------------------------------------------------------------
# Wrappers
# ---------------------------------------------------------------------------

def _round_up(x, m):
    return ((x + m - 1) // m) * m


def _pick_tile_n(hw, c_padded, itemsize, vmem_budget_bytes=24 << 20):
    """Largest multiple-of-128 spatial tile whose double-buffer fits the budget."""
    hw128 = _round_up(hw, 128)
    max_tn = max(128, vmem_budget_bytes // (2 * c_padded * itemsize))
    tn = min(hw128, 8192, max_tn)
    return max(128, (tn // 128) * 128)


def _prepare_input(x):
    """Flatten (1, C, H, W) -> zero-padded (Cp, HWp) slab; return tiling params."""
    B, C, H, W = x.shape
    if B != 1:
        raise ValueError("gram_matrix's view(C, H*W) requires batch == 1")
    hw = H * W
    xf = x.reshape(C, hw)
    itemsize = jnp.dtype(x.dtype).itemsize
    sublane = 8 if itemsize >= 4 else (16 if itemsize == 2 else 32)
    cp = _round_up(C, sublane)
    tn = _pick_tile_n(hw, cp, itemsize)
    hwp = _round_up(hw, tn)
    if cp != C or hwp != hw:
        xf = jnp.pad(xf, ((0, cp - C), (0, hwp - hw)))
    return xf, cp, hwp, tn


def _gram_padded(xf, cp, hwp, tn):
    """Tiled gram of a zero-padded (cp, hwp) slab -> (cp, cp) f32."""
    kt = hwp // tn
    itemsize = jnp.dtype(xf.dtype).itemsize
    return pl.pallas_call(
        gram_accum_kernel,
        out_shape=jax.ShapeDtypeStruct((cp, cp), jnp.float32),
        grid=(kt,),
        in_specs=[pl.BlockSpec((cp, tn), lambda k: (0, k))],
        out_specs=pl.BlockSpec((cp, cp), lambda k: (0, 0)),
        compiler_params=pltpu.CompilerParams(
            dimension_semantics=("arbitrary",)),
        cost_estimate=pl.CostEstimate(
            flops=2 * cp * cp * hwp,
            transcendentals=0,
            bytes_accessed=cp * hwp * itemsize + cp * cp * 4),
    )(xf)


def gram_matrix(x):
    """Pallas equivalent of the PyTorch gram_matrix (requires batch == 1)."""
    _, C, _, _ = x.shape
    xf, cp, hwp, tn = _prepare_input(x)
    g = _gram_padded(xf, cp, hwp, tn)
    return g[:C, :C].astype(x.dtype)


class StyleLoss:
    """JAX/Pallas port of the PyTorch StyleLoss module (forward returns the MSE scalar)."""

    def __init__(self, target):
        _, C, _, _ = target.shape
        self.channels = C
        xf, cp, hwp, tn = _prepare_input(target)
        self.cp = cp
        # Padded (cp, cp) f32 target gram stays in this layout so the loss
        # kernel can keep it resident in VMEM for the whole grid.
        self.target_gram = _gram_padded(xf, cp, hwp, tn)

    def __call__(self, x):
        _, C, _, _ = x.shape
        assert C == self.channels, "channel count must match the target"
        xf, cp, hwp, tn = _prepare_input(x)
        assert cp == self.cp
        kt = hwp // tn
        itemsize = jnp.dtype(xf.dtype).itemsize
        inv_count = 1.0 / float(C * C)  # mean over the *unpadded* C*C entries

        kernel = functools.partial(style_loss_kernel, inv_count=inv_count)
        out = pl.pallas_call(
            kernel,
            out_shape=jax.ShapeDtypeStruct((1, 1), jnp.float32),
            grid=(kt,),
            in_specs=[
                pl.BlockSpec((cp, tn), lambda k: (0, k)),    # streamed spatial tiles
                pl.BlockSpec((cp, cp), lambda k: (0, 0)),    # resident target gram
            ],
            out_specs=pl.BlockSpec((1, 1), lambda k: (0, 0)),
            scratch_shapes=[pltpu.VMEM((cp, cp), jnp.float32)],
            compiler_params=pltpu.CompilerParams(
                dimension_semantics=("arbitrary",)),
            cost_estimate=pl.CostEstimate(
                flops=2 * cp * cp * hwp + 3 * cp * cp,
                transcendentals=0,
                bytes_accessed=cp * hwp * itemsize + cp * cp * 4 + 4),
        )(xf, self.target_gram)
        return out[0, 0]


# ---------------------------------------------------------------------------
# Demo / correctness check
# ---------------------------------------------------------------------------

if __name__ == "__main__":
    key = jax.random.PRNGKey(0)
    k_t, k_x = jax.random.split(key)

    B, C, H, W = 1, 4, 16, 16  # batch must be 1 (view(C, H*W) in the spec)
    target = jax.random.normal(k_t, (B, C, H, W), dtype=jnp.float32)
    x = jax.random.normal(k_x, (B, C, H, W), dtype=jnp.float32)

    style_loss = StyleLoss(target)
    loss = jax.block_until_ready(style_loss(x))

    # Plain-JAX reference (matches the unnormalized PyTorch spec).
    def _gram_ref(t):
        tf = t.reshape(C, H * W).astype(jnp.float32)
        return tf @ tf.T

    ref = jnp.mean((_gram_ref(x) - _gram_ref(target)) ** 2)
    assert jnp.allclose(loss, ref, rtol=1e-5, atol=1e-3), (loss, ref)

    g = jax.block_until_ready(gram_matrix(x))
    assert jnp.allclose(g, _gram_ref(x), rtol=1e-5, atol=1e-3)

    print("KERNEL_OK")
</pallas_src>

<mosaic_0001>
module attributes {stable_mosaic.version = 11 : i64} {
  func.func @gram_accum_kernel(%arg0: i32, %arg1: memref<8x256xf32, #tpu.memory_space<vmem>>, %arg2: memref<8x8xf32, #tpu.memory_space<vmem>>) attributes {dimension_semantics = [#tpu.dimension_semantics<arbitrary>], iteration_bounds = array<i64: 1>, scalar_prefetch = 0 : i64, scratch_operands = 0 : i64, tpu.core_type = #tpu.core_type<tc>, window_params = [{transform_indices = @transform_0, window_bounds = array<i64: 8, 256>}, {pipeline_mode = #tpu.pipeline_mode<synchronous>, transform_indices = @transform_1, window_bounds = array<i64: 8, 8>}]} {
    %c0_i32 = arith.constant 0 : i32
    %0 = arith.cmpi eq, %arg0, %c0_i32 : i32
    %1 = arith.extui %0 : i1 to i32
    %c0_i32_0 = arith.constant 0 : i32
    %2 = arith.cmpi ne, %1, %c0_i32_0 : i32
    scf.if %2 {
      %cst_6 = arith.constant 0.000000e+00 : f32
      %8 = vector.broadcast %cst_6 : f32 to vector<8x8xf32>
      %c0_7 = arith.constant 0 : index
      %c0_8 = arith.constant 0 : index
      %9 = vector.load %arg2[%c0_7, %c0_8] : memref<8x8xf32, #tpu.memory_space<vmem>>, vector<8x8xf32>
      tpu.vector_store %arg2[%c0_7, %c0_8], %8 {strides = array<i32>} : memref<8x8xf32, #tpu.memory_space<vmem>>, vector<8x8xf32>,
    } else {
    }
    %c0 = arith.constant 0 : index
    %c0_1 = arith.constant 0 : index
    %3 = vector.load %arg1[%c0, %c0_1] : memref<8x256xf32, #tpu.memory_space<vmem>>, vector<8x256xf32>
    %c0_2 = arith.constant 0 : index
    %c0_3 = arith.constant 0 : index
    %4 = vector.load %arg2[%c0_2, %c0_3] : memref<8x8xf32, #tpu.memory_space<vmem>>, vector<8x8xf32>
    %cst = arith.constant dense<0.000000e+00> : vector<8x8xf32>
    %5 = tpu.matmul %3, %3, %cst {dimension_numbers = #tpu.dot_dimension_numbers<[1], [1], [0], [0], [0, 0, 1, 0], [], []>} : vector<8x256xf32>, vector<8x256xf32>, vector<8x8xf32> -> vector<8x8xf32>
    %6 = arith.addf %4, %5 : vector<8x8xf32>
    %c0_4 = arith.constant 0 : index
    %c0_5 = arith.constant 0 : index
    %7 = vector.load %arg2[%c0_4, %c0_5] : memref<8x8xf32, #tpu.memory_space<vmem>>, vector<8x8xf32>
    tpu.vector_store %arg2[%c0_4, %c0_5], %6 {strides = array<i32>} : memref<8x8xf32, #tpu.memory_space<vmem>>, vector<8x8xf32>,
    return
  }
  func.func @transform_0(%arg0: i32) -> (i32, i32) {
    %c0_i32 = arith.constant 0 : i32
    %c0_i32_0 = arith.constant 0 : i32
    return %c0_i32, %arg0 : i32, i32
  }
  func.func @transform_1(%arg0: i32) -> (i32, i32) {
    %c0_i32 = arith.constant 0 : i32
    %c0_i32_0 = arith.constant 0 : i32
    %c0_i32_1 = arith.constant 0 : i32
    return %c0_i32, %c0_i32_0 : i32, i32
  }
}

</mosaic_0001>

<llo_original>
// kernel: tpu_custom_call.1
$region0: #{tpu_custom_call.1}
  #allocation0 [shape = 'u32[]', space=smem, size = 0x4, offset = 0x4, fixed_abs, tag = 'smem constant byte address 0x4 - core index']
  #allocation1 [shape = 'u32[144,128]{1,0:T(1,128)}', space=vmem, size = 0x12000, scoped, tag = 'internal scratch']
  %s0 = inlined_call_operand.hbm [shape: f32[8,256], index: 0, kind: input, shape index: {}]
  %s1 = inlined_call_operand.hbm [shape: f32[8,8], index: 1, kind: output, shape index: {}]
  %s2 = sld [smem:[#allocation0]]
  $region22: #{tpu_custom_call.1} parent=0
    _
  %s4 = ssub.s32 1, %s2
  %s5 = scalar_select 0, %s4, %s2
  $region1: #{tpu_custom_call.1} parent=0
    #allocation2 [shape = 'u8[8192]{0}', space=vmem, size = 0x2000, scoped, tag = 'input window, operand 0, single buffered']
    #allocation3 [shape = 's32[1]{0}', space=sflag, size = 0x4, scoped, tag = 'scoped memory for tpu_custom_call.1']
    #allocation4 [shape = 's32[1]{0}', space=sflag, size = 0x4, scoped, tag = 'scoped memory for tpu_custom_call.1']
    #allocation5 [shape = 'u8[4096]{0}', space=vmem, size = 0x1000, scoped, tag = 'output window, operand 0, single buffered']
    %6 = vsyncpa [#allocation3], 0
    %7 = vsyncpa [#allocation4], 0
    // Predicated region
    $region2: #{tpu_custom_call.1} parent=1 // pred_check
      _
    $region3: #{tpu_custom_call.1} parent=1 // pred_check_branch
      %9 = sbr.rel (0) target = $region5
    $region4: #{tpu_custom_call.1} parent=1 // pred_region
      %s11 = ssub.s32 256, 256
      %12 = vsyncadd [#allocation3], %s11
      %s14 = sshll.u32 [#allocation2], 4
      %s15 = int_to_ptr.vmem [resolvable:$true] %s14
      %17 = dma.hbm_to_vmem [thread:$0]  %s0, 256, %s15, [#allocation3]
    $region5: #{tpu_custom_call.1} parent=1 // pred_fallthru
      _
    // Predicated region
    $region6: #{tpu_custom_call.1} parent=1 // pred_check
      _
    $region7: #{tpu_custom_call.1} parent=1 // pred_check_branch
      %19 = sbr.rel (0) target = $region9
    $region8: #{tpu_custom_call.1} parent=1 // pred_region
      %20 = dma.done [#allocation3], 256
    $region9: #{tpu_custom_call.1} parent=1 // pred_fallthru
      _
    %p21 = scmp.eq.s32.totalorder 0, 0
    // Predicated region
    $region10: #{tpu_custom_call.1} parent=1 // pred_check
      %p22 = pneg %p21
    $region11: #{tpu_custom_call.1} parent=1 // pred_check_branch
      %24 = sbr.rel (%p22) target = $region13
    $region12: #{tpu_custom_call.1} parent=1 // pred_region
      %vm25 = vcmask 64512
      %26 = vst.msk [vmem:[#allocation5] sm:$0xff] %vm25, 0.0
    $region13: #{tpu_custom_call.1} parent=1 // pred_fallthru
      _
    %v27 = vld [vmem:[#allocation2] sm:$0xff]
    %v28 = vld [vmem:[#allocation2 + $0x8] sm:$0xff]
    %v29 = vld [vmem:[#allocation5] sm:$0xff]
    %30 = vmatprep.subr.mxu0 0.0
    %31 = vmatpush1.xpose.msra.mxu0 0.0
    %32 = vmatprep.subr.mxu0 0.0
    %33 = vmatpush1.xpose.msra.mxu0 0.0
    %34 = vmatprep.subr.mxu0 0.0
    %35 = vmatpush1.xpose.msra.mxu0 0.0
    %36 = vmatprep.subr.mxu0 0.0
    %37 = vmatpush1.xpose.msra.mxu0 0.0
    %38 = vmatprep.subr.mxu0 0.0
    %39 = vmatpush1.xpose.msra.mxu0 0.0
    %40 = vmatprep.subr.mxu0 0.0
    %41 = vmatpush1.xpose.msra.mxu0 0.0
    %42 = vmatprep.subr.mxu0 0.0
    %43 = vmatpush1.xpose.msra.mxu0 0.0
    %44 = vmatprep.subr.mxu0 0.0
    %45 = vmatpush1.xpose.msra.mxu0 0.0
    %46 = vmatprep.subr.mxu0 0.0
    %47 = vmatpush1.xpose.msra.mxu0 0.0
    %48 = vmatprep.subr.mxu0 0.0
    %49 = vmatpush1.xpose.msra.mxu0 0.0
    %50 = vmatprep.subr.mxu0 0.0
    %51 = vmatpush1.xpose.msra.mxu0 0.0
    %52 = vmatprep.subr.mxu0 0.0
    %53 = vmatpush1.xpose.msra.mxu0 0.0
    %54 = vmatprep.subr.mxu0 0.0
    %55 = vmatpush1.xpose.msra.mxu0 0.0
    %56 = vmatprep.subr.mxu0 0.0
    %57 = vmatpush1.xpose.msra.mxu0 0.0
    %58 = vmatprep.subr.mxu0 0.0
    %59 = vmatpush1.xpose.msra.mxu0 0.0
    %60 = vmatprep.subr.mxu0 %v28
    %61 = vmatpush1.xpose.msra.mxu0 %v27
    %62 = vmatprep.subr.mxu0 0.0
    %63 = vmatpush2.xpose.msra.mxu0 0.0
    %64 = vmatprep.subr.mxu0 0.0
    %65 = vmatpush2.xpose.msra.mxu0 0.0
    %66 = vmatprep.subr.mxu0 0.0
    %67 = vmatpush2.xpose.msra.mxu0 0.0
    %68 = vmatprep.subr.mxu0 0.0
    %69 = vmatpush2.xpose.msra.mxu0 0.0
    %70 = vmatprep.subr.mxu0 0.0
    %71 = vmatpush2.xpose.msra.mxu0 0.0
    %72 = vmatprep.subr.mxu0 0.0
    %73 = vmatpush2.xpose.msra.mxu0 0.0
    %74 = vmatprep.subr.mxu0 0.0
    %75 = vmatpush2.xpose.msra.mxu0 0.0
    %76 = vmatprep.subr.mxu0 0.0
    %77 = vmatpush2.xpose.msra.mxu0 0.0
    %78 = vmatprep.subr.mxu0 0.0
    %79 = vmatpush2.xpose.msra.mxu0 0.0
    %80 = vmatprep.subr.mxu0 0.0
    %81 = vmatpush2.xpose.msra.mxu0 0.0
    %82 = vmatprep.subr.mxu0 0.0
    %83 = vmatpush2.xpose.msra.mxu0 0.0
    %84 = vmatprep.subr.mxu0 0.0
    %85 = vmatpush2.xpose.msra.mxu0 0.0
    %86 = vmatprep.subr.mxu0 0.0
    %87 = vmatpush2.xpose.msra.mxu0 0.0
    %88 = vmatprep.subr.mxu0 0.0
    %89 = vmatpush2.xpose.msra.mxu0 0.0
    %90 = vmatprep.subr.mxu0 0.0
    %91 = vmatpush2.xpose.msra.mxu0 0.0
    %92 = vmatprep.subr.mxu0 0.0
    %93 = vmatpush2.xpose.msra.mxu0 0.0
    %94 = vmatprep.mubr.f32.mxu0 %v28
    %95 = vmatmul.mubr.f32.gmra.mxu0 %v27
    %v96 = vpop.f32.mrf.mxu0
    %v97 = vadd.f32 0.0, %v96
    %v98 = vpop.f32.mrf.mxu0
    %99 = vdwg.mxu0
    %v100 = vadd.f32 %v29, %v97
    %vm101 = vcmask 64512
    %102 = vst.msk [vmem:[#allocation5] sm:$0xff] %vm101, %v100
    // Predicated region
    $region14: #{tpu_custom_call.1} parent=1 // pred_check
      _
    $region15: #{tpu_custom_call.1} parent=1 // pred_check_branch
      %104 = sbr.rel (0) target = $region17
    $region16: #{tpu_custom_call.1} parent=1 // pred_region
      %s106 = ssub.s32 128, 128
      %107 = vsyncadd [#allocation4], %s106
      %s109 = sshll.u32 [#allocation5], 4
      %s110 = int_to_ptr.vmem [resolvable:$true] %s109
      %112 = dma.vmem_to_hbm [thread:$0]  %s110, 128, %s1, [#allocation4]
    $region17: #{tpu_custom_call.1} parent=1 // pred_fallthru
      _
    // Predicated region
    $region18: #{tpu_custom_call.1} parent=1 // pred_check
      _
    $region19: #{tpu_custom_call.1} parent=1 // pred_check_branch
      %114 = sbr.rel (0) target = $region21
    $region20: #{tpu_custom_call.1} parent=1 // pred_region
      %115 = dma.done [#allocation4], 128
    $region21: #{tpu_custom_call.1} parent=1 // pred_fallthru
      _
    %116 = vsyncpa [#allocation3], 1
    %117 = vsyncpa [#allocation4], 1

</llo_original>
